<compile_context>
chip_gen: v5e
topology: v5e:2x2
jax: 0.10.0
libtpu: 0.0.40
codegen_flags: <defaults>
</compile_context>

<pallas_src>
import functools

import jax
import jax.numpy as jnp
from jax import lax
from jax.experimental import pallas as pl
from jax.experimental.pallas import tpu as pltpu


# --------------------------------------------------------------------------
# Kernel 1: fused 1x1-conv projections  x(C,TN) -> Q(C8,TN), K(C8,TN), V(C,TN)
# --------------------------------------------------------------------------
def _qkv_proj_kernel(x_ref, wqk_ref, wv_ref, bqk_ref, bv_ref,
                     q_ref, k_ref, v_ref, *, c8, compute_dtype):
    x = x_ref[...].astype(compute_dtype)                             # (C, TN)
    qk = lax.dot_general(wqk_ref[...].astype(compute_dtype), x,
                         (((0,), (0,)), ((), ())),
                         preferred_element_type=jnp.float32) + bqk_ref[...]
    v = lax.dot_general(wv_ref[...].astype(compute_dtype), x,
                        (((0,), (0,)), ((), ())),
                        preferred_element_type=jnp.float32) + bv_ref[...]
    q_ref[...] = qk[:c8, :].astype(q_ref.dtype)                      # (C8, TN)
    k_ref[...] = qk[c8:, :].astype(k_ref.dtype)                      # (C8, TN)
    v_ref[...] = v.astype(v_ref.dtype)                               # (C, TN)


# --------------------------------------------------------------------------
# Kernel 2: flash attention + residual for one (batch, q-tile, kv-tile) step
# --------------------------------------------------------------------------
def _flash_attn_kernel(q_ref, k_ref, v_ref, x_ref, g_ref, o_ref,
                       m_sc, l_sc, acc_sc, *, compute_dtype, approx_recip):
    ki = pl.program_id(2)

    @pl.when(ki == 0)
    def _init():
        m_sc[...] = jnp.full(m_sc.shape, -jnp.inf, jnp.float32)
        l_sc[...] = jnp.zeros(l_sc.shape, jnp.float32)
        acc_sc[...] = jnp.zeros(acc_sc.shape, jnp.float32)

    # Energy tile, stored transposed: s[j, i] = sum_d K[d, j] * Q[d, i].
    # Contracting over the leading (C8) dims — no explicit transpose.
    s = lax.dot_general(k_ref[...], q_ref[...],
                        (((0,), (0,)), ((), ())),
                        preferred_element_type=jnp.float32)          # (TK, TQ)

    m_prev = m_sc[...]                                               # (1, TQ)
    m_new = jnp.maximum(m_prev, jnp.max(s, axis=0, keepdims=True))   # (1, TQ)
    alpha = jnp.exp(m_prev - m_new)                                  # (1, TQ)
    p = jnp.exp(s - m_new)                                           # (TK, TQ)

    l_sc[...] = alpha * l_sc[...] + jnp.sum(p, axis=0, keepdims=True)
    acc_sc[...] = alpha * acc_sc[...] + lax.dot_general(
        v_ref[...], p.astype(compute_dtype),
        (((1,), (0,)), ((), ())),
        preferred_element_type=jnp.float32)                          # (C, TQ)
    m_sc[...] = m_new

    @pl.when(ki == pl.num_programs(2) - 1)
    def _finalize():
        gamma = g_ref[0, 0]                                          # SMEM scalar
        out = acc_sc[...] * pl.reciprocal(l_sc[...], approx=approx_recip)
        o_ref[...] = (gamma * out + x_ref[...]).astype(o_ref.dtype)  # (C, TQ)


def _pick_tile(n, target):
    """Largest lane-aligned divisor of n that is <= target (or n itself)."""
    if n <= target:
        return n
    t = (target // 128) * 128
    while t >= 128:
        if n % t == 0:
            return t
        t -= 128
    return n


# --------------------------------------------------------------------------
# Wrapper
# --------------------------------------------------------------------------
def self_attention_pallas(x_nchw, wq, wk, wv, bq, bk, bv, gamma, *,
                          compute_dtype=jnp.bfloat16,
                          q_tile=256, kv_tile=512, proj_tile=512):
    """x_nchw: (B,C,H,W). wq/wk: (C, C//8), wv: (C, C) (transposed 1x1 conv
    kernels); biases (1, Cout); gamma scalar."""
    B, C, H, W = x_nchw.shape
    N = H * W
    C8 = wq.shape[1]
    out_dtype = x_nchw.dtype

    tq = _pick_tile(N, q_tile)
    tk = _pick_tile(N, kv_tile)
    tn = _pick_tile(N, proj_tile)
    exact_f32 = jnp.dtype(compute_dtype) == jnp.dtype(jnp.float32)

    # Free reshape only — positions land on the lane dimension.
    x = x_nchw.reshape(B, C, N)

    # Fused Q|K projection weights; biases as (Cout, 1) columns.
    wqk = jnp.concatenate([wq, wk], axis=1)                          # (C, 2*C8)
    bqk = jnp.concatenate([bq, bk], axis=1).reshape(2 * C8, 1).astype(jnp.float32)
    bv_col = jnp.reshape(bv, (C, 1)).astype(jnp.float32)
    gamma_smem = jnp.reshape(gamma, (1, 1)).astype(jnp.float32)

    vmem_cap = 32 * 1024 * 1024  # safe on v5e/v6e (128 MiB) and v7x (64 MiB)

    # ---- Kernel 1: projections (Q, K, V computed once per batch) ----------
    q_p, k_p, v_p = pl.pallas_call(
        functools.partial(_qkv_proj_kernel, c8=C8, compute_dtype=compute_dtype),
        out_shape=(jax.ShapeDtypeStruct((B, C8, N), compute_dtype),
                   jax.ShapeDtypeStruct((B, C8, N), compute_dtype),
                   jax.ShapeDtypeStruct((B, C, N), compute_dtype)),
        grid_spec=pltpu.PrefetchScalarGridSpec(
            num_scalar_prefetch=0,
            grid=(B, N // tn),
            in_specs=[
                pl.BlockSpec((None, C, tn), lambda b, n: (b, 0, n)),   # x tile
                pl.BlockSpec((C, 2 * C8), lambda b, n: (0, 0)),        # [Wq|Wk]
                pl.BlockSpec((C, C), lambda b, n: (0, 0)),             # Wv
                pl.BlockSpec((2 * C8, 1), lambda b, n: (0, 0)),        # [bq|bk]
                pl.BlockSpec((C, 1), lambda b, n: (0, 0)),             # bv
            ],
            out_specs=[
                pl.BlockSpec((None, C8, tn), lambda b, n: (b, 0, n)),
                pl.BlockSpec((None, C8, tn), lambda b, n: (b, 0, n)),
                pl.BlockSpec((None, C, tn), lambda b, n: (b, 0, n)),
            ]),
        compiler_params=pltpu.CompilerParams(
            dimension_semantics=("parallel", "parallel"),
            vmem_limit_bytes=vmem_cap),
    )(x, wqk, wv, bqk, bv_col)

    # ---- Kernel 2: flash attention + residual, output in (B, C, N) --------
    out = pl.pallas_call(
        functools.partial(_flash_attn_kernel, compute_dtype=compute_dtype,
                          approx_recip=bool(not exact_f32)),
        out_shape=jax.ShapeDtypeStruct((B, C, N), out_dtype),
        grid_spec=pltpu.PrefetchScalarGridSpec(
            num_scalar_prefetch=0,
            grid=(B, N // tq, N // tk),
            in_specs=[
                pl.BlockSpec((None, C8, tq), lambda b, qi, ki: (b, 0, qi)),  # Q
                pl.BlockSpec((None, C8, tk), lambda b, qi, ki: (b, 0, ki)),  # K
                pl.BlockSpec((None, C, tk), lambda b, qi, ki: (b, 0, ki)),   # V
                pl.BlockSpec((None, C, tq), lambda b, qi, ki: (b, 0, qi)),   # x (residual)
                pl.BlockSpec(memory_space=pltpu.MemorySpace.SMEM),           # gamma
            ],
            out_specs=pl.BlockSpec((None, C, tq), lambda b, qi, ki: (b, 0, qi)),
            scratch_shapes=[
                pltpu.VMEM((1, tq), jnp.float32),   # running max  m
                pltpu.VMEM((1, tq), jnp.float32),   # running sum  l
                pltpu.VMEM((C, tq), jnp.float32),   # output accumulator
            ]),
        compiler_params=pltpu.CompilerParams(
            dimension_semantics=("parallel", "parallel", "arbitrary"),
            vmem_limit_bytes=vmem_cap),
    )(q_p, k_p, v_p, x, gamma_smem)

    return out.reshape(B, C, H, W)


# --------------------------------------------------------------------------
# Pure-JAX reference (mirrors the torch forward; optional bf16 MXU operands
# with f32 accumulation to mirror the kernel's fast path)
# --------------------------------------------------------------------------
def self_attention_ref(x_nchw, wq, wk, wv, bq, bk, bv, gamma,
                       compute_dtype=jnp.float32):
    B, C, H, W = x_nchw.shape
    N = H * W
    cd = compute_dtype
    x = jnp.transpose(x_nchw.reshape(B, C, N), (0, 2, 1))            # (B, N, C)
    xc = x.astype(cd)
    q = jnp.einsum('bnc,cd->bnd', xc, wq.astype(cd),
                   preferred_element_type=jnp.float32) + bq          # (B, N, C8)
    k = jnp.einsum('bnc,cd->bnd', xc, wk.astype(cd),
                   preferred_element_type=jnp.float32) + bk
    v = jnp.einsum('bnc,cd->bnd', xc, wv.astype(cd),
                   preferred_element_type=jnp.float32) + bv          # (B, N, C)
    energy = jnp.einsum('bic,bjc->bij', q.astype(cd), k.astype(cd),
                        preferred_element_type=jnp.float32)          # (B, N, N)
    attn = jax.nn.softmax(energy, axis=-1)
    out = jnp.einsum('bij,bjc->bic', attn.astype(cd), v.astype(cd),
                     preferred_element_type=jnp.float32)             # (B, N, C)
    out = gamma * out + x
    return jnp.transpose(out, (0, 2, 1)).reshape(B, C, H, W)


if __name__ == "__main__":
    key = jax.random.PRNGKey(0)
    B, C, H, W = 2, 32, 8, 8           # in_dim = 32  ->  C//8 = 4, N = 64
    C8 = C // 8

    ks = jax.random.split(key, 8)
    x = jax.random.normal(ks[0], (B, C, H, W), jnp.float32)

    # Conv weights: kaiming_normal_ (fan_in = in_channels for 1x1 conv),
    # stored transposed as (C_in, C_out).
    std = jnp.sqrt(2.0 / C)
    wq = jax.random.normal(ks[1], (C, C8), jnp.float32) * std
    wk = jax.random.normal(ks[2], (C, C8), jnp.float32) * std
    wv = jax.random.normal(ks[3], (C, C), jnp.float32) * std
    bnd = 1.0 / jnp.sqrt(jnp.float32(C))
    bq = jax.random.uniform(ks[4], (1, C8), jnp.float32, -bnd, bnd)
    bk = jax.random.uniform(ks[5], (1, C8), jnp.float32, -bnd, bnd)
    bv = jax.random.uniform(ks[6], (1, C), jnp.float32, -bnd, bnd)
    # gamma initializes to 0 in the module; use nonzero so attention contributes.
    gamma = jnp.float32(0.5)

    # ---- Exact f32 path: matches torch forward semantics tightly ----------
    out_f32 = self_attention_pallas(x, wq, wk, wv, bq, bk, bv, gamma,
                                    compute_dtype=jnp.float32)
    out_f32 = jax.block_until_ready(out_f32)
    ref_f32 = self_attention_ref(x, wq, wk, wv, bq, bk, bv, gamma,
                                 compute_dtype=jnp.float32)
    assert out_f32.shape == (B, C, H, W)
    assert jnp.allclose(out_f32, ref_f32, atol=2e-4, rtol=2e-4), \
        "f32 path mismatch vs reference"

    # ---- Default fast path: bf16 MXU operands, f32 accumulation -----------
    out_bf16 = self_attention_pallas(x, wq, wk, wv, bq, bk, bv, gamma)
    out_bf16 = jax.block_until_ready(out_bf16)
    ref_bf16 = self_attention_ref(x, wq, wk, wv, bq, bk, bv, gamma,
                                  compute_dtype=jnp.bfloat16)
    assert jnp.allclose(out_bf16, ref_bf16, atol=2e-2, rtol=2e-2), \
        "bf16 path mismatch vs reference"

    print("KERNEL_OK")
</pallas_src>

<mosaic_0001>
module attributes {stable_mosaic.version = 11 : i64} {
  func.func @_qkv_proj_kernel(%arg0: i32, %arg1: i32, %arg2: memref<1x32x64xf32, #tpu.memory_space<vmem>>, %arg3: memref<32x8xf32, #tpu.memory_space<vmem>>, %arg4: memref<32x32xf32, #tpu.memory_space<vmem>>, %arg5: memref<8x1xf32, #tpu.memory_space<vmem>>, %arg6: memref<32x1xf32, #tpu.memory_space<vmem>>, %arg7: memref<1x4x64xf32, #tpu.memory_space<vmem>>, %arg8: memref<1x4x64xf32, #tpu.memory_space<vmem>>, %arg9: memref<1x32x64xf32, #tpu.memory_space<vmem>>) attributes {dimension_semantics = [#tpu.dimension_semantics<parallel>, #tpu.dimension_semantics<parallel>], iteration_bounds = array<i64: 2, 1>, scalar_prefetch = 0 : i64, scratch_operands = 0 : i64, tpu.core_type = #tpu.core_type<tc>, window_params = [{transform_indices = @transform_0, window_bounds = array<i64: 1, 32, 64>}, {pipeline_mode = #tpu.pipeline_mode<synchronous>, transform_indices = @transform_1, window_bounds = array<i64: 32, 8>}, {pipeline_mode = #tpu.pipeline_mode<synchronous>, transform_indices = @transform_2, window_bounds = array<i64: 32, 32>}, {pipeline_mode = #tpu.pipeline_mode<synchronous>, transform_indices = @transform_3, window_bounds = array<i64: 8, 1>}, {pipeline_mode = #tpu.pipeline_mode<synchronous>, transform_indices = @transform_4, window_bounds = array<i64: 32, 1>}, {transform_indices = @transform_5, window_bounds = array<i64: 1, 4, 64>}, {transform_indices = @transform_6, window_bounds = array<i64: 1, 4, 64>}, {transform_indices = @transform_7, window_bounds = array<i64: 1, 32, 64>}]} {
    %c0 = arith.constant 0 : index
    %c0_0 = arith.constant 0 : index
    %c0_1 = arith.constant 0 : index
    %0 = vector.load %arg2[%c0, %c0_0, %c0_1] : memref<1x32x64xf32, #tpu.memory_space<vmem>>, vector<1x32x64xf32>
    %1 = vector.shape_cast %0 : vector<1x32x64xf32> to vector<32x64xf32>
    %c0_2 = arith.constant 0 : index
    %c0_3 = arith.constant 0 : index
    %2 = vector.load %arg3[%c0_2, %c0_3] : memref<32x8xf32, #tpu.memory_space<vmem>>, vector<32x8xf32>
    %cst = arith.constant dense<0.000000e+00> : vector<8x64xf32>
    %3 = tpu.matmul %2, %1, %cst {dimension_numbers = #tpu.dot_dimension_numbers<[0], [0], [1], [1], [0, 1, 1, 1], [], []>} : vector<32x8xf32>, vector<32x64xf32>, vector<8x64xf32> -> vector<8x64xf32>
    %c0_4 = arith.constant 0 : index
    %c0_5 = arith.constant 0 : index
    %4 = vector.load %arg5[%c0_4, %c0_5] : memref<8x1xf32, #tpu.memory_space<vmem>>, vector<8x1xf32>
    %5 = vector.broadcast %4 : vector<8x1xf32> to vector<8x64xf32>
    %6 = arith.addf %3, %5 : vector<8x64xf32>
    %c0_6 = arith.constant 0 : index
    %c0_7 = arith.constant 0 : index
    %7 = vector.load %arg4[%c0_6, %c0_7] : memref<32x32xf32, #tpu.memory_space<vmem>>, vector<32x32xf32>
    %cst_8 = arith.constant dense<0.000000e+00> : vector<32x64xf32>
    %8 = tpu.matmul %7, %1, %cst_8 {dimension_numbers = #tpu.dot_dimension_numbers<[0], [0], [1], [1], [0, 1, 1, 1], [], []>} : vector<32x32xf32>, vector<32x64xf32>, vector<32x64xf32> -> vector<32x64xf32>
    %c0_9 = arith.constant 0 : index
    %c0_10 = arith.constant 0 : index
    %9 = vector.load %arg6[%c0_9, %c0_10] : memref<32x1xf32, #tpu.memory_space<vmem>>, vector<32x1xf32>
    %10 = vector.broadcast %9 : vector<32x1xf32> to vector<32x64xf32>
    %11 = arith.addf %8, %10 : vector<32x64xf32>
    %12 = vector.extract_strided_slice %6 {offsets = [0, 0], sizes = [4, 64], strides = [1, 1]} : vector<8x64xf32> to vector<4x64xf32>
    %c0_11 = arith.constant 0 : index
    %c0_12 = arith.constant 0 : index
    %c0_13 = arith.constant 0 : index
    %13 = vector.load %arg7[%c0_11, %c0_12, %c0_13] : memref<1x4x64xf32, #tpu.memory_space<vmem>>, vector<1x4x64xf32>
    %14 = vector.shape_cast %13 : vector<1x4x64xf32> to vector<4x64xf32>
    %15 = vector.shape_cast %12 : vector<4x64xf32> to vector<1x4x64xf32>
    tpu.vector_store %arg7[%c0_11, %c0_12, %c0_13], %15 {strides = array<i32>} : memref<1x4x64xf32, #tpu.memory_space<vmem>>, vector<1x4x64xf32>,
    %16 = vector.extract_strided_slice %6 {offsets = [4, 0], sizes = [4, 64], strides = [1, 1]} : vector<8x64xf32> to vector<4x64xf32>
    %c0_14 = arith.constant 0 : index
    %c0_15 = arith.constant 0 : index
    %c0_16 = arith.constant 0 : index
    %17 = vector.load %arg8[%c0_14, %c0_15, %c0_16] : memref<1x4x64xf32, #tpu.memory_space<vmem>>, vector<1x4x64xf32>
    %18 = vector.shape_cast %17 : vector<1x4x64xf32> to vector<4x64xf32>
    %19 = vector.shape_cast %16 : vector<4x64xf32> to vector<1x4x64xf32>
    tpu.vector_store %arg8[%c0_14, %c0_15, %c0_16], %19 {strides = array<i32>} : memref<1x4x64xf32, #tpu.memory_space<vmem>>, vector<1x4x64xf32>,
    %c0_17 = arith.constant 0 : index
    %c0_18 = arith.constant 0 : index
    %c0_19 = arith.constant 0 : index
    %20 = vector.load %arg9[%c0_17, %c0_18, %c0_19] : memref<1x32x64xf32, #tpu.memory_space<vmem>>, vector<1x32x64xf32>
    %21 = vector.shape_cast %20 : vector<1x32x64xf32> to vector<32x64xf32>
    %22 = vector.shape_cast %11 : vector<32x64xf32> to vector<1x32x64xf32>
    tpu.vector_store %arg9[%c0_17, %c0_18, %c0_19], %22 {strides = array<i32>} : memref<1x32x64xf32, #tpu.memory_space<vmem>>, vector<1x32x64xf32>,
    return
  }
  func.func @transform_0(%arg0: i32, %arg1: i32) -> (i32, i32, i32) {
    %c0_i32 = arith.constant 0 : i32
    %c0_i32_0 = arith.constant 0 : i32
    return %arg0, %c0_i32, %arg1 : i32, i32, i32
  }
  func.func @transform_1(%arg0: i32, %arg1: i32) -> (i32, i32) {
    %c0_i32 = arith.constant 0 : i32
    %c0_i32_0 = arith.constant 0 : i32
    %c0_i32_1 = arith.constant 0 : i32
    return %c0_i32, %c0_i32_0 : i32, i32
  }
  func.func @transform_2(%arg0: i32, %arg1: i32) -> (i32, i32) {
    %c0_i32 = arith.constant 0 : i32
    %c0_i32_0 = arith.constant 0 : i32
    %c0_i32_1 = arith.constant 0 : i32
    return %c0_i32, %c0_i32_0 : i32, i32
  }
  func.func @transform_3(%arg0: i32, %arg1: i32) -> (i32, i32) {
    %c0_i32 = arith.constant 0 : i32
    %c0_i32_0 = arith.constant 0 : i32
    %c0_i32_1 = arith.constant 0 : i32
    return %c0_i32, %c0_i32_0 : i32, i32
  }
  func.func @transform_4(%arg0: i32, %arg1: i32) -> (i32, i32) {
    %c0_i32 = arith.constant 0 : i32
    %c0_i32_0 = arith.constant 0 : i32
    %c0_i32_1 = arith.constant 0 : i32
    return %c0_i32, %c0_i32_0 : i32, i32
  }
  func.func @transform_5(%arg0: i32, %arg1: i32) -> (i32, i32, i32) {
    %c0_i32 = arith.constant 0 : i32
    %c0_i32_0 = arith.constant 0 : i32
    return %arg0, %c0_i32, %arg1 : i32, i32, i32
  }
  func.func @transform_6(%arg0: i32, %arg1: i32) -> (i32, i32, i32) {
    %c0_i32 = arith.constant 0 : i32
    %c0_i32_0 = arith.constant 0 : i32
    return %arg0, %c0_i32, %arg1 : i32, i32, i32
  }
  func.func @transform_7(%arg0: i32, %arg1: i32) -> (i32, i32, i32) {
    %c0_i32 = arith.constant 0 : i32
    %c0_i32_0 = arith.constant 0 : i32
    return %arg0, %c0_i32, %arg1 : i32, i32, i32
  }
}

</mosaic_0001>

<llo_original>
// kernel: tpu_custom_call.1
$region0: #{tpu_custom_call.1}
  #allocation0 [shape = 'u32[]', space=smem, size = 0x4, offset = 0x4, fixed_abs, tag = 'smem constant byte address 0x4 - core index']
  #allocation1 [shape = 'u32[72,128]{1,0:T(1,128)}', space=vmem, size = 0x9000, scoped, tag = 'internal scratch']
  %s0 = inlined_call_operand.vmem [shape: f32[2,32,64], index: 0, kind: input, shape index: {}]
  %s1 = inlined_call_operand.vmem [shape: f32[32,8], index: 1, kind: input, shape index: {}]
  %s2 = inlined_call_operand.hbm [shape: f32[32,32], index: 2, kind: input, shape index: {}]
  %s3 = inlined_call_operand.vmem [shape: f32[8,1], index: 3, kind: input, shape index: {}]
  %s4 = inlined_call_operand.vmem [shape: f32[32,1], index: 4, kind: input, shape index: {}]
  %s5 = inlined_call_operand.hbm [shape: f32[2,4,64], index: 5, kind: output, shape index: {0}]
  %s6 = inlined_call_operand.hbm [shape: f32[2,4,64], index: 6, kind: output, shape index: {1}]
  %s7 = inlined_call_operand.hbm [shape: f32[2,32,64], index: 7, kind: output, shape index: {2}]
  %8 = xla_tuple %s5, %s6, %s7
  %s9 = sld [smem:[#allocation0]]
  $region73: #{tpu_custom_call.1} parent=0
    _
  %s11 = ssub.s32 1, %s9
  %s12 = scalar_select 0, %s11, %s9
  $region1: #{tpu_custom_call.1} parent=0
    #allocation2 [shape = 'u8[16384]{0}', space=vmem, size = 0x4000, scoped, tag = 'input window, operand 2, single buffered']
    #allocation3 [shape = 's32[2]{0}', space=sflag, size = 0x8, scoped, tag = 'scoped memory for tpu_custom_call.1']
    #allocation4 [shape = 's32[2]{0}', space=sflag, size = 0x8, scoped, tag = 'scoped memory for tpu_custom_call.1']
    #allocation5 [shape = 'u8[4096]{0}', space=vmem, size = 0x1000, scoped, tag = 'output window, operand 0']
    #allocation6 [shape = 'u8[4096]{0}', space=vmem, size = 0x1000, scoped, tag = 'output window, operand 1']
    #allocation7 [shape = 's32[2]{0}', space=sflag, size = 0x8, scoped, tag = 'scoped memory for tpu_custom_call.1']
    #allocation8 [shape = 'u8[32768]{0}', space=vmem, size = 0x8000, scoped, tag = 'output window, operand 2']
    %13 = vsyncpa [#allocation3], 0
    %14 = vsyncpa [#allocation4], 0
    %s15 = scalar_lea.sflag [#allocation4], 1
    %16 = vsyncpa %s15, 0
    %17 = vsyncpa [#allocation7], 0
    %s18 = scalar_lea.sflag [#allocation7], 1
    %19 = vsyncpa %s18, 0
    loop: start=0, step=1, limit=4
    $region2: #{tpu_custom_call.1} parent=1 // loop_pre_header
      _
    $region3: #{tpu_custom_call.1} parent=1 // loop_header
      %s21 = sphi 0, %s25
      %p22 = scmp.ge.s32.totalorder %s21, 4
      %s28 = sphi 0, %s40
      %s29 = sphi 0, %s36
      %s30 = sphi 0, %s28
      %s31 = sphi 0, %s29
      %s32 = sphi 0, %s30
      %s33 = sphi 0, %s31
      %s45 = sphi 0, %s47
      %s48 = sphi 0, %s45
      %s49 = sphi 0, %s48
      %s65 = sphi 0, %s49
      %s69 = sphi 0, %s69
      %s71 = sphi 0, %s69
      %s72 = sphi 0, %s71
      %s86 = sphi 0, %s72
      %s90 = sphi 0, %s90
      %s92 = sphi 0, %s90
      %s93 = sphi 0, %s92
      %s107 = sphi 0, %s93
      %s111 = sphi 0, %s111
      %s113 = sphi 0, %s111
      %s114 = sphi 0, %s113
      %s128 = sphi 0, %s114
      %s132 = sphi 0, %s132
      %s134 = sphi 0, %s132
      %s135 = sphi 0, %s134
      %s149 = sphi 0, %s135
      %s157 = sphi 0, %s159
      %s160 = sphi 0, %s157
      %s161 = sphi 0, %s160
      %s177 = sphi 0, %s161
      %s185 = sphi 0, %s187
      %s188 = sphi 0, %s185
      %s189 = sphi 0, %s188
      %s205 = sphi 0, %s189
      %s213 = sphi 0, %s215
      %s216 = sphi 0, %s213
      %s217 = sphi 0, %s216
      %s233 = sphi 0, %s217
    $region4: #{tpu_custom_call.1} parent=1 // loop_header_branch
      %24 = sbr.rel (%p22) target = $region8
    $region5: #{tpu_custom_call.1} parent=1 // loop_body
      %s26 = ssub.s32 %s21, 1
      %s27 = ssub.s32 %s21, 2
      %s34 = sadd.s32 1, %s29
      %p35 = scmp.ge.s32.totalorder %s34, 1
      %s36 = scalar_select %p35, 0, %s34
      %s37 = sadd.s32 1, %s28
      %s38 = scalar_select %p35, %s37, %s28
      %p39 = scmp.ge.s32.totalorder %s38, 2
      %s40 = scalar_select %p39, 0, %s38
      %s41 = ssub.s32 %s28, %s40
      %s42 = ssub.s32 %s29, %s36
      %s43 = sor.u32 %s41, %s42
      %p44 = scmp.eq.s32.totalorder %s43, 0
      %s46 = sadd.s32 %s45, 1
      %s47 = scalar_select %p44, %s45, %s46
      %p50 = pneg %p44
      %p51 = scmp.eq.s32.totalorder %s21, 1
      %p52 = por %p50, %p51
      %p53 = scmp.ne.s32.totalorder %s45, %s48
      %p54 = scmp.eq.s32.totalorder %s21, 0
      %p55 = por %p53, %p54
      %p56 = scmp.ne.s32.totalorder %s45, %s48
      %p57 = scmp.eq.s32.totalorder %s26, 1
      %p58 = por %p56, %p57
      %p59 = scmp.ne.s32.totalorder %s48, %s49
      %p60 = scmp.eq.s32.totalorder %s26, 0
      %p61 = por %p59, %p60
      %p62 = scmp.ne.s32.totalorder %s48, %s49
      %p63 = scmp.eq.s32.totalorder %s27, 1
      %p64 = por %p62, %p63
      %p66 = scmp.ne.s32.totalorder %s49, %s65
      %p67 = scmp.eq.s32.totalorder %s27, 0
      %p68 = por %p66, %p67
      %s70 = sadd.s32 %s69, 1
      %p73 = scmp.eq.s32.totalorder %s21, 1
      %p74 = scmp.ne.s32.totalorder %s69, %s71
      %p75 = scmp.eq.s32.totalorder %s21, 0
      %p76 = por %p74, %p75
      %p77 = scmp.ne.s32.totalorder %s69, %s71
      %p78 = scmp.eq.s32.totalorder %s26, 1
      %p79 = por %p77, %p78
      %p80 = scmp.ne.s32.totalorder %s71, %s72
      %p81 = scmp.eq.s32.totalorder %s26, 0
      %p82 = por %p80, %p81
      %p83 = scmp.ne.s32.totalorder %s71, %s72
      %p84 = scmp.eq.s32.totalorder %s27, 1
      %p85 = por %p83, %p84
      %p87 = scmp.ne.s32.totalorder %s72, %s86
      %p88 = scmp.eq.s32.totalorder %s27, 0
      %p89 = por %p87, %p88
      %s91 = sadd.s32 %s90, 1
      %p94 = scmp.eq.s32.totalorder %s21, 1
      %p95 = scmp.ne.s32.totalorder %s90, %s92
      %p96 = scmp.eq.s32.totalorder %s21, 0
      %p97 = por %p95, %p96
      %p98 = scmp.ne.s32.totalorder %s90, %s92
      %p99 = scmp.eq.s32.totalorder %s26, 1
      %p100 = por %p98, %p99
      %p101 = scmp.ne.s32.totalorder %s92, %s93
      %p102 = scmp.eq.s32.totalorder %s26, 0
      %p103 = por %p101, %p102
      %p104 = scmp.ne.s32.totalorder %s92, %s93
      %p105 = scmp.eq.s32.totalorder %s27, 1
      %p106 = por %p104, %p105
      %p108 = scmp.ne.s32.totalorder %s93, %s107
      %p109 = scmp.eq.s32.totalorder %s27, 0
      %p110 = por %p108, %p109
      %s112 = sadd.s32 %s111, 1
      %p115 = scmp.eq.s32.totalorder %s21, 1
      %p116 = scmp.ne.s32.totalorder %s111, %s113
      %p117 = scmp.eq.s32.totalorder %s21, 0
      %p118 = por %p116, %p117
      %p119 = scmp.ne.s32.totalorder %s111, %s113
      %p120 = scmp.eq.s32.totalorder %s26, 1
      %p121 = por %p119, %p120
      %p122 = scmp.ne.s32.totalorder %s113, %s114
      %p123 = scmp.eq.s32.totalorder %s26, 0
      %p124 = por %p122, %p123
      %p125 = scmp.ne.s32.totalorder %s113, %s114
      %p126 = scmp.eq.s32.totalorder %s27, 1
      %p127 = por %p125, %p126
      %p129 = scmp.ne.s32.totalorder %s114, %s128
      %p130 = scmp.eq.s32.totalorder %s27, 0
      %p131 = por %p129, %p130
      %s133 = sadd.s32 %s132, 1
      %p136 = scmp.eq.s32.totalorder %s21, 1
      %p137 = scmp.ne.s32.totalorder %s132, %s134
      %p138 = scmp.eq.s32.totalorder %s21, 0
      %p139 = por %p137, %p138
      %p140 = scmp.ne.s32.totalorder %s132, %s134
      %p141 = scmp.eq.s32.totalorder %s26, 1
      %p142 = por %p140, %p141
      %p143 = scmp.ne.s32.totalorder %s134, %s135
      %p144 = scmp.eq.s32.totalorder %s26, 0
      %p145 = por %p143, %p144
      %p146 = scmp.ne.s32.totalorder %s134, %s135
      %p147 = scmp.eq.s32.totalorder %s27, 1
      %p148 = por %p146, %p147
      %p150 = scmp.ne.s32.totalorder %s135, %s149
      %p151 = scmp.eq.s32.totalorder %s27, 0
      %p152 = por %p150, %p151
      %s153 = ssub.s32 %s28, %s40
      %s154 = ssub.s32 %s29, %s36
      %s155 = sor.u32 %s153, %s154
      %p156 = scmp.eq.s32.totalorder %s155, 0
      %s158 = sadd.s32 %s157, 1
      %s159 = scalar_select %p156, %s157, %s158
      %p162 = pneg %p156
      %p163 = scmp.eq.s32.totalorder %s21, 1
      %p164 = por %p162, %p163
      %p165 = scmp.ne.s32.totalorder %s157, %s160
      %p166 = scmp.eq.s32.totalorder %s21, 0
      %p167 = por %p165, %p166
      %p168 = scmp.ne.s32.totalorder %s157, %s160
      %p169 = scmp.eq.s32.totalorder %s26, 1
      %p170 = por %p168, %p169
      %p171 = scmp.ne.s32.totalorder %s160, %s161
      %p172 = scmp.eq.s32.totalorder %s26, 0
      %p173 = por %p171, %p172
      %p174 = scmp.ne.s32.totalorder %s160, %s161
      %p175 = scmp.eq.s32.totalorder %s27, 1
      %p176 = por %p174, %p175
      %p178 = scmp.ne.s32.totalorder %s161, %s177
      %p179 = scmp.eq.s32.totalorder %s27, 0
      %p180 = por %p178, %p179
      %s181 = ssub.s32 %s28, %s40
      %s182 = ssub.s32 %s29, %s36
      %s183 = sor.u32 %s181, %s182
      %p184 = scmp.eq.s32.totalorder %s183, 0
      %s186 = sadd.s32 %s185, 1
      %s187 = scalar_select %p184, %s185, %s186
      %p190 = pneg %p184
      %p191 = scmp.eq.s32.totalorder %s21, 1
      %p192 = por %p190, %p191
      %p193 = scmp.ne.s32.totalorder %s185, %s188
      %p194 = scmp.eq.s32.totalorder %s21, 0
      %p195 = por %p193, %p194
      %p196 = scmp.ne.s32.totalorder %s185, %s188
      %p197 = scmp.eq.s32.totalorder %s26, 1
      %p198 = por %p196, %p197
      %p199 = scmp.ne.s32.totalorder %s188, %s189
      %p200 = scmp.eq.s32.totalorder %s26, 0
      %p201 = por %p199, %p200
      %p202 = scmp.ne.s32.totalorder %s188, %s189
      %p203 = scmp.eq.s32.totalorder %s27, 1
      %p204 = por %p202, %p203
      %p206 = scmp.ne.s32.totalorder %s189, %s205
      %p207 = scmp.eq.s32.totalorder %s27, 0
      %p208 = por %p206, %p207
      %s209 = ssub.s32 %s28, %s40
      %s210 = ssub.s32 %s29, %s36
      %s211 = sor.u32 %s209, %s210
      %p212 = scmp.eq.s32.totalorder %s211, 0
      %s214 = sadd.s32 %s213, 1
      %s215 = scalar_select %p212, %s213, %s214
      %p218 = pneg %p212
      %p219 = scmp.eq.s32.totalorder %s21, 1
      %p220 = por %p218, %p219
      %p221 = scmp.ne.s32.totalorder %s213, %s216
      %p222 = scmp.eq.s32.totalorder %s21, 0
      %p223 = por %p221, %p222
      %p224 = scmp.ne.s32.totalorder %s213, %s216
      %p225 = scmp.eq.s32.totalorder %s26, 1
      %p226 = por %p224, %p225
      %p227 = scmp.ne.s32.totalorder %s216, %s217
      %p228 = scmp.eq.s32.totalorder %s26, 0
      %p229 = por %p227, %p228
      %p230 = scmp.ne.s32.totalorder %s216, %s217
      %p231 = scmp.eq.s32.totalorder %s27, 1
      %p232 = por %p230, %p231
      %p234 = scmp.ne.s32.totalorder %s217, %s233
      %p235 = scmp.eq.s32.totalorder %s27, 0
      %p236 = por %p234, %p235
      %p237 = scmp.le.s32.totalorder 1, %s21
      %p238 = scmp.lt.s32.totalorder %s21, 3
      %p239 = pnand %p237, %p238
      %p240 = pneg %p239
      // Predicated region
      $region9: #{tpu_custom_call.1} parent=5 // pred_check
        _
      $region10: #{tpu_custom_call.1} parent=5 // pred_check_branch
        %242 = sbr.rel (%p239) target = $region12
      $region11: #{tpu_custom_call.1} parent=5 // pred_region
        %s243 = ssub.s32 %s21, 1
        // Predicated region
        $region13: #{tpu_custom_call.1} parent=11 // pred_check
          %p244 = pneg %p82
        $region14: #{tpu_custom_call.1} parent=11 // pred_check_branch
          %246 = sbr.rel (%p244) target = $region16
        $region15: #{tpu_custom_call.1} parent=11 // pred_region
          _
        $region16: #{tpu_custom_call.1} parent=11 // pred_fallthru
          _
        // Predicated region
        $region17: #{tpu_custom_call.1} parent=11 // pred_check
          %p247 = pneg %p103
        $region18: #{tpu_custom_call.1} parent=11 // pred_check_branch
          %249 = sbr.rel (%p247) target = $region20
        $region19: #{tpu_custom_call.1} parent=11 // pred_region
          %251 = vsyncadd [#allocation3], 0
          %s252 = sshll.u32 %s2, 4
          %s253 = int_to_ptr.hbm [resolvable:$true] %s252
          %s254 = sshll.u32 [#allocation2], 4
          %s255 = int_to_ptr.vmem [resolvable:$true] %s254
          %260 = dma.hbm_to_vmem [thread:$0]  %s253, 512, %s255, [#allocation3], 128, 128, 8
        $region20: #{tpu_custom_call.1} parent=11 // pred_fallthru
          _
        // Predicated region
        $region21: #{tpu_custom_call.1} parent=11 // pred_check
          %p261 = pneg %p124
        $region22: #{tpu_custom_call.1} parent=11 // pred_check_branch
          %263 = sbr.rel (%p261) target = $region24
        $region23: #{tpu_custom_call.1} parent=11 // pred_region
          _
        $region24: #{tpu_custom_call.1} parent=11 // pred_fallthru
          _
        // Predicated region
        $region25: #{tpu_custom_call.1} parent=11 // pred_check
          %p264 = pneg %p145
        $region26: #{tpu_custom_call.1} parent=11 // pred_check_branch
          %266 = sbr.rel (%p264) target = $region28
        $region27: #{tpu_custom_call.1} parent=11 // pred_region
          _
        $region28: #{tpu_custom_call.1} parent=11 // pred_fallthru
          _
      $region12: #{tpu_custom_call.1} parent=5 // pred_fallthru
        _
      %p267 = scmp.lt.s32.totalorder %s21, 2
      // Predicated region
      $region29: #{tpu_custom_call.1} parent=5 // pred_check
        %p268 = pneg %p267
      $region30: #{tpu_custom_call.1} parent=5 // pred_check_branch
        %270 = sbr.rel (%p268) target = $region32
      $region31: #{tpu_custom_call.1} parent=5 // pred_region
        // Predicated region
        $region33: #{tpu_custom_call.1} parent=31 // pred_check
          %p271 = pneg %p55
        $region34: #{tpu_custom_call.1} parent=31 // pred_check_branch
          %273 = sbr.rel (%p271) target = $region36
        $region35: #{tpu_custom_call.1} parent=31 // pred_region
          %p274 = scmp.lt.s32.totalorder %s28, 1
          %s275 = scalar_select %p274, %s28, 1
          %p276 = scmp.lt.s32.totalorder %s29, 0
          %s277 = scalar_select %p276, %s29, 0
          %s278 = smul.addr %s275, 4
          %s279 = sadd.s32 %s277, %s278
          %s280 = smul.addr %s279, 8
          %s281 = scalar_lea.vmem %s0, %s280
        $region36: #{tpu_custom_call.1} parent=31 // pred_fallthru
          _
      $region32: #{tpu_custom_call.1} parent=5 // pred_fallthru
        _
      %p282 = scmp.le.s32.totalorder 1, %s21
      %p283 = scmp.lt.s32.totalorder %s21, 3
      %p284 = pnand %p282, %p283
      %p285 = pneg %p284
      // Predicated region
      $region37: #{tpu_custom_call.1} parent=5 // pred_check
        _
      $region38: #{tpu_custom_call.1} parent=5 // pred_check_branch
        %287 = sbr.rel (%p284) target = $region40
      $region39: #{tpu_custom_call.1} parent=5 // pred_region
        %s288 = ssub.s32 %s21, 1
        // Predicated region
        $region41: #{tpu_custom_call.1} parent=39 // pred_check
          %p289 = pneg %p103
        $region42: #{tpu_custom_call.1} parent=39 // pred_check_branch
          %291 = sbr.rel (%p289) target = $region44
        $region43: #{tpu_custom_call.1} parent=39 // pred_region
          %293 = dma.done [#allocation3], 512
        $region44: #{tpu_custom_call.1} parent=39 // pred_fallthru
          _
        %p294 = scmp.lt.s32.totalorder %s30, 1
        %s295 = scalar_select %p294, %s30, 1
        %p296 = scmp.lt.s32.totalorder %s31, 0
        %s297 = scalar_select %p296, %s31, 0
        %s298 = smul.addr %s295, 4
        %s299 = sadd.s32 %s297, %s298
        %s300 = smul.addr %s299, 8
        %s301 = scalar_lea.vmem %s0, %s300
        %p302 = pneg %p61
        %p303 = pneg %p58
        %p304 = pneg %p82
        %p305 = pneg %p79
        %p306 = pneg %p103
        %p307 = pneg %p100
        %p308 = pneg %p124
        %p309 = pneg %p121
        %p310 = pneg %p145
        %p311 = pneg %p142
        %p312 = pneg %p173
        %p313 = pneg %p170
        %s314 = sand.u32 %s160, 1
        %s315 = scalar_lea.sflag [#allocation4], %s314
        %s316 = sand.u32 %s160, 1
        %s317 = smul.addr %s316, 4
        %s318 = scalar_lea.vmem [#allocation5], %s317
        %p319 = pneg %p201
        %p320 = pneg %p198
        %s321 = sand.u32 %s26, 1
        %s322 = scalar_lea.sflag [#allocation7], %s321
        %s323 = sand.u32 %s188, 1
        %s324 = smul.addr %s323, 4
        %s325 = scalar_lea.vmem [#allocation6], %s324
        %p326 = pneg %p229
        %p327 = pneg %p226
        %s328 = sand.u32 %s26, 1
        %s329 = scalar_lea.sflag [#allocation7], %s328
        %s330 = sand.u32 %s216, 1
        %s331 = smul.addr %s330, 32
        %s332 = scalar_lea.vmem [#allocation8], %s331
        %p333 = scmp.lt.s32.totalorder %s30, 1
        %s334 = scalar_select %p333, %s30, 1
        %p335 = scmp.lt.s32.totalorder %s31, 0
        %s336 = scalar_select %p335, %s31, 0
        %s337 = smul.addr %s334, 4
        %s338 = sadd.s32 %s336, %s337
        %s339 = smul.addr %s338, 8
        %s340 = scalar_lea.vmem %s0, %s339
        %v341 = vld [vmem:[%s340] sm:$0xff]
        %v342 = vld [vmem:[%s340 + $0x8] sm:$0xff]
        %v343 = vld [vmem:[%s340 + $0x10] sm:$0xff]
        %v344 = vld [vmem:[%s340 + $0x18] sm:$0xff]
        %v345 = vld [vmem:[%s1] sm:$0xff]
        %v346 = vld [vmem:[%s1 + $0x8] sm:$0xff]
        %v347 = vld [vmem:[%s1 + $0x10] sm:$0xff]
        %v348 = vld [vmem:[%s1 + $0x18] sm:$0xff]
        %v349 = vld [vmem:[%s3] sm:$0xff]
        %351 = vset.pattern.permute.xlu0 0
        %352 = vperm.xlu0 %351, %v349
        %v353 = vpop.permute.xlu0 %352
        %355 = vxpose.xlu0.b32.start [1/16] %v345, 128
        %356 = vxpose.xlu0.b32.cont [2/16] %v346, 128
        %357 = vxpose.xlu0.b32.cont [3/16] %v347, 128
        %358 = vxpose.xlu0.b32.cont [4/16] %v348, 128
        %359 = vxpose.xlu0.b32.cont [5/16] 0.0, 128
        %360 = vxpose.xlu0.b32.cont [6/16] 0.0, 128
        %361 = vxpose.xlu0.b32.cont [7/16] 0.0, 128
        %362 = vxpose.xlu0.b32.cont [8/16] 0.0, 128
        %363 = vxpose.xlu0.b32.cont [9/16] 0.0, 128
        %364 = vxpose.xlu0.b32.cont [10/16] 0.0, 128
        %365 = vxpose.xlu0.b32.cont [11/16] 0.0, 128
        %366 = vxpose.xlu0.b32.cont [12/16] 0.0, 128
        %367 = vxpose.xlu0.b32.cont [13/16] 0.0, 128
        %368 = vxpose.xlu0.b32.cont [14/16] 0.0, 128
        %369 = vxpose.xlu0.b32.cont [15/16] 0.0, 128
        %370 = vxpose.xlu0.b32.end [16/16] 0.0, 128
        %v371 = vpop.trf.xlu0
        %v372 = vpop.trf.xlu0
        %v373 = vpop.trf.xlu0
        %v374 = vpop.trf.xlu0
        %v375 = vpop.trf.xlu0
        %v376 = vpop.trf.xlu0
        %v377 = vpop.trf.xlu0
        %v378 = vpop.trf.xlu0
        %v379 = vpop.trf.xlu0
        %v380 = vpop.trf.xlu0
        %v381 = vpop.trf.xlu0
        %v382 = vpop.trf.xlu0
        %v383 = vpop.trf.xlu0
        %v384 = vpop.trf.xlu0
        %v385 = vpop.trf.xlu0
        %v386 = vpop.trf.xlu0
        %vm387 = vcmask 261120
        %v389 = vsel %vm387, %v371, 0
        %391 = vmatpush.msra.mxu0 0.0
        %392 = vmatpush.msra.mxu0 0.0
        %393 = vmatpush.msra.mxu0 0.0
        %394 = vmatpush.msra.mxu0 0.0
        %395 = vmatpush.msra.mxu0 0.0
        %396 = vmatpush.msra.mxu0 0.0
        %397 = vmatpush.msra.mxu0 0.0
        %398 = vmatpush.msra.mxu0 0.0
        %399 = vmatpush.msra.mxu0 0.0
        %400 = vmatpush.msra.mxu0 0.0
        %401 = vmatpush.msra.mxu0 0.0
        %402 = vmatpush.msra.mxu0 0.0
        %403 = vmatpush.msra.mxu0 %v344
        %404 = vmatpush.msra.mxu0 %v343
        %405 = vmatpush.msra.mxu0 %v342
        %406 = vmatpush.msra.mxu0 %v341
        %407 = vmatmul.f32.gmra.mxu0 %v389
        %v408 = vpop.f32.mrf.mxu0
        %v409 = vadd.f32 %v353, %v408
        %410 = vdwg.mxu0
        %v411 = vld [vmem:[#allocation2] sm:$0xff]
        %v412 = vld [vmem:[#allocation2 + $0x8] sm:$0xff]
        %v413 = vld [vmem:[#allocation2 + $0x10] sm:$0xff]
        %v414 = vld [vmem:[#allocation2 + $0x18] sm:$0xff]
        %v415 = vld [vmem:[%s4] sm:$0xff]
        %v416 = vld [vmem:[%s4 + $0x8] sm:$0xff]
        %v417 = vld [vmem:[%s4 + $0x10] sm:$0xff]
        %v418 = vld [vmem:[%s4 + $0x18] sm:$0xff]
        %420 = vset.pattern.permute.xlu0 0
        %421 = vperm.xlu0 %420, %v415
        %v422 = vpop.permute.xlu0 %421
        %425 = vset.pattern.permute.xlu0 0
        %426 = vperm.xlu0 %425, %v416
        %v427 = vpop.permute.xlu0 %426
        %430 = vset.pattern.permute.xlu0 0
        %431 = vperm.xlu0 %430, %v417
        %v432 = vpop.permute.xlu0 %431
        %435 = vset.pattern.permute.xlu0 0
        %436 = vperm.xlu0 %435, %v418
        %v437 = vpop.permute.xlu0 %436
        %439 = vxpose.xlu0.b32.start [1/16] %v411, 128
        %440 = vxpose.xlu0.b32.cont [2/16] %v412, 128
        %441 = vxpose.xlu0.b32.cont [3/16] %v413, 128
        %442 = vxpose.xlu0.b32.cont [4/16] %v414, 128
        %443 = vxpose.xlu0.b32.cont [5/16] 0.0, 128
        %444 = vxpose.xlu0.b32.cont [6/16] 0.0, 128
        %445 = vxpose.xlu0.b32.cont [7/16] 0.0, 128
        %446 = vxpose.xlu0.b32.cont [8/16] 0.0, 128
        %447 = vxpose.xlu0.b32.cont [9/16] 0.0, 128
        %448 = vxpose.xlu0.b32.cont [10/16] 0.0, 128
        %449 = vxpose.xlu0.b32.cont [11/16] 0.0, 128
        %450 = vxpose.xlu0.b32.cont [12/16] 0.0, 128
        %451 = vxpose.xlu0.b32.cont [13/16] 0.0, 128
        %452 = vxpose.xlu0.b32.cont [14/16] 0.0, 128
        %453 = vxpose.xlu0.b32.cont [15/16] 0.0, 128
        %454 = vxpose.xlu0.b32.end [16/16] 0.0, 128
        %v455 = vpop.trf.xlu0
        %v456 = vpop.trf.xlu0
        %v457 = vpop.trf.xlu0
        %v458 = vpop.trf.xlu0
        %v459 = vpop.trf.xlu0
        %v460 = vpop.trf.xlu0
        %v461 = vpop.trf.xlu0
        %v462 = vpop.trf.xlu0
        %v463 = vpop.trf.xlu0
        %v464 = vpop.trf.xlu0
        %v465 = vpop.trf.xlu0
        %v466 = vpop.trf.xlu0
        %v467 = vpop.trf.xlu0
        %v468 = vpop.trf.xlu0
        %v469 = vpop.trf.xlu0
        %v470 = vpop.trf.xlu0
        %v472 = vsel %vm387, %v455, 0
        %v475 = vsel %vm387, %v456, 0
        %v478 = vsel %vm387, %v457, 0
        %v481 = vsel %vm387, %v458, 0
        %483 = vmatpush.msra.mxu0 0.0
        %484 = vmatpush.msra.mxu0 0.0
        %485 = vmatpush.msra.mxu0 0.0
        %486 = vmatpush.msra.mxu0 0.0
        %487 = vmatpush.msra.mxu0 0.0
        %488 = vmatpush.msra.mxu0 0.0
        %489 = vmatpush.msra.mxu0 0.0
        %490 = vmatpush.msra.mxu0 0.0
        %491 = vmatpush.msra.mxu0 0.0
        %492 = vmatpush.msra.mxu0 0.0
        %493 = vmatpush.msra.mxu0 0.0
        %494 = vmatpush.msra.mxu0 0.0
        %495 = vmatpush.msra.mxu0 %v344
        %496 = vmatpush.msra.mxu0 %v343
        %497 = vmatpush.msra.mxu0 %v342
        %498 = vmatpush.msra.mxu0 %v341
        %499 = vmatmul.f32.gmra.mxu0 %v472
        %v500 = vpop.f32.mrf.mxu0
        %v501 = vadd.f32 %v422, %v500
        %502 = vmatmul.f32.gmra.mxu0 %v475
        %v503 = vpop.f32.mrf.mxu0
        %v504 = vadd.f32 %v427, %v503
        %505 = vmatmul.f32.gmra.mxu0 %v478
        %v506 = vpop.f32.mrf.mxu0
        %v507 = vadd.f32 %v432, %v506
        %508 = vmatmul.f32.gmra.mxu0 %v481
        %v509 = vpop.f32.mrf.mxu0
        %v510 = vadd.f32 %v437, %v509
        %511 = vdwg.mxu0
        %vm512 = vcmask 519168
        %513 = vst.msk [vmem:[%s318] sm:$0xf] %vm512, %v409
        %vm514 = vcmask 523268
        %515 = vst.msk [vmem:[%s325 - $0x4] sm:$0xf0] %vm514, %v409
        %vm516 = vcmask 523264
        %517 = vst.msk [vmem:[%s332] sm:$0xff] %vm516, %v501
        %518 = vst.msk [vmem:[%s332 + $0x8] sm:$0xff] %vm516, %v504
        %519 = vst.msk [vmem:[%s332 + $0x10] sm:$0xff] %vm516, %v507
        %520 = vst.msk [vmem:[%s332 + $0x18] sm:$0xff] %vm516, %v510
        %s521 = sand.u32 %s160, 1
        %s522 = scalar_lea.sflag [#allocation4], %s521
        %s523 = sand.u32 %s160, 1
        %s524 = smul.addr %s523, 4
        %s525 = scalar_lea.vmem [#allocation5], %s524
        %s526 = sand.u32 %s26, 1
        %s527 = scalar_lea.sflag [#allocation7], %s526
        %s528 = sand.u32 %s188, 1
        %s529 = smul.addr %s528, 4
        %s530 = scalar_lea.vmem [#allocation6], %s529
        %s531 = sand.u32 %s26, 1
        %s532 = scalar_lea.sflag [#allocation7], %s531
        %s533 = sand.u32 %s216, 1
        %s534 = smul.addr %s533, 32
        %s535 = scalar_lea.vmem [#allocation8], %s534
        // Predicated region
        $region45: #{tpu_custom_call.1} parent=39 // pred_check
          %p536 = pneg %p170
        $region46: #{tpu_custom_call.1} parent=39 // pred_check_branch
          %538 = sbr.rel (%p536) target = $region48
        $region47: #{tpu_custom_call.1} parent=39 // pred_region
          %540 = vsyncadd %s522, 0
          %s541 = sadd.s32 %s31, %s30
          %s542 = smul.addr %s541, 4
          %s543 = scalar_lea.hbm %s5, %s542
          %s545 = sshll.u32 %s525, 4
          %s546 = int_to_ptr.vmem [resolvable:$true] %s545
          %s547 = sshll.u32 %s543, 4
          %s548 = int_to_ptr.hbm [resolvable:$true] %s547
          %550 = dma.vmem_to_hbm [thread:$0]  %s546, 64, %s548, %s522
        $region48: #{tpu_custom_call.1} parent=39 // pred_fallthru
          _
        // Predicated region
        $region49: #{tpu_custom_call.1} parent=39 // pred_check
          %p551 = pneg %p198
        $region50: #{tpu_custom_call.1} parent=39 // pred_check_branch
          %553 = sbr.rel (%p551) target = $region52
        $region51: #{tpu_custom_call.1} parent=39 // pred_region
          %555 = vsyncadd %s527, 0
          %s556 = sadd.s32 %s31, %s30
          %s557 = smul.addr %s556, 4
          %s558 = scalar_lea.hbm %s6, %s557
          %s560 = sshll.u32 %s530, 4
          %s561 = int_to_ptr.vmem [resolvable:$true] %s560
          %s562 = sshll.u32 %s558, 4
          %s563 = int_to_ptr.hbm [resolvable:$true] %s562
          %565 = dma.vmem_to_hbm [thread:$0]  %s561, 64, %s563, %s527
        $region52: #{tpu_custom_call.1} parent=39 // pred_fallthru
          _
        // Predicated region
        $region53: #{tpu_custom_call.1} parent=39 // pred_check
          %p566 = pneg %p226
        $region54: #{tpu_custom_call.1} parent=39 // pred_check_branch
          %568 = sbr.rel (%p566) target = $region56
        $region55: #{tpu_custom_call.1} parent=39 // pred_region
          %570 = vsyncadd %s532, 0
          %s571 = smul.addr %s30, 4
          %s572 = sadd.s32 %s31, %s571
          %s573 = smul.addr %s572, 8
          %s574 = scalar_lea.hbm %s7, %s573
          %s575 = sshll.u32 %s535, 4
          %s576 = int_to_ptr.vmem [resolvable:$true] %s575
          %s577 = sshll.u32 %s574, 4
          %s578 = int_to_ptr.hbm [resolvable:$true] %s577
          %583 = dma.vmem_to_hbm [thread:$0]  %s576, 512, %s578, %s532, 128, 128, 8
        $region56: #{tpu_custom_call.1} parent=39 // pred_fallthru
          _
      $region40: #{tpu_custom_call.1} parent=5 // pred_fallthru
        _
      %p584 = scmp.le.s32.totalorder 2, %s21
      // Predicated region
      $region57: #{tpu_custom_call.1} parent=5 // pred_check
        %p585 = pneg %p584
      $region58: #{tpu_custom_call.1} parent=5 // pred_check_branch
        %587 = sbr.rel (%p585) target = $region60
      $region59: #{tpu_custom_call.1} parent=5 // pred_region
        %s588 = ssub.s32 %s21, 2
        // Predicated region
        $region61: #{tpu_custom_call.1} parent=59 // pred_check
          %p589 = pneg %p176
        $region62: #{tpu_custom_call.1} parent=59 // pred_check_branch
          %591 = sbr.rel (%p589) target = $region64
        $region63: #{tpu_custom_call.1} parent=59 // pred_region
          %s592 = sand.u32 %s161, 1
          %s593 = scalar_lea.sflag [#allocation4], %s592
          %s594 = sand.u32 %s161, 1
          %s595 = smul.addr %s594, 4
          %s596 = scalar_lea.vmem [#allocation5], %s595
          %598 = dma.done %s593, 64
        $region64: #{tpu_custom_call.1} parent=59 // pred_fallthru
          _
        // Predicated region
        $region65: #{tpu_custom_call.1} parent=59 // pred_check
          %p599 = pneg %p204
        $region66: #{tpu_custom_call.1} parent=59 // pred_check_branch
          %601 = sbr.rel (%p599) target = $region68
        $region67: #{tpu_custom_call.1} parent=59 // pred_region
          %s602 = sand.u32 %s27, 1
          %s603 = scalar_lea.sflag [#allocation7], %s602
          %s604 = sand.u32 %s189, 1
          %s605 = smul.addr %s604, 4
          %s606 = scalar_lea.vmem [#allocation6], %s605
          %608 = dma.done %s603, 64
        $region68: #{tpu_custom_call.1} parent=59 // pred_fallthru
          _
        // Predicated region
        $region69: #{tpu_custom_call.1} parent=59 // pred_check
          %p609 = pneg %p232
        $region70: #{tpu_custom_call.1} parent=59 // pred_check_branch
          %611 = sbr.rel (%p609) target = $region72
        $region71: #{tpu_custom_call.1} parent=59 // pred_region
          %s612 = sand.u32 %s27, 1
          %s613 = scalar_lea.sflag [#allocation7], %s612
          %s614 = sand.u32 %s217, 1
          %s615 = smul.addr %s614, 32
          %s616 = scalar_lea.vmem [#allocation8], %s615
          %618 = dma.done %s613, 512
        $region72: #{tpu_custom_call.1} parent=59 // pred_fallthru
          _
      $region60: #{tpu_custom_call.1} parent=5 // pred_fallthru
        _
    $region6: #{tpu_custom_call.1} parent=1 // loop_footer
      %s25 = sadd.s32 1, %s21
    $region7: #{tpu_custom_call.1} parent=1 // loop_footer_branch
      %20 = sbr.rel target = $region3
    $region8: #{tpu_custom_call.1} parent=1 // loop_exit
      _
    %619 = vsyncpa [#allocation3], 1
    %s620 = scalar_lea.sflag [#allocation3], 1
    %621 = vsyncpa %s620, 1
    %622 = vsyncpa [#allocation4], 1
    %s623 = scalar_lea.sflag [#allocation4], 1
    %624 = vsyncpa %s623, 1
    %625 = vsyncpa [#allocation7], 1
    %s626 = scalar_lea.sflag [#allocation7], 1
    %627 = vsyncpa %s626, 1

</llo_original>
